<compile_context>
chip_gen: v7x
topology: tpu7x:2x2x1
jax: 0.10.0
libtpu: 0.0.40
codegen_flags: <defaults>
</compile_context>

<pallas_src>
import functools

import jax
import jax.numpy as jnp
from jax import lax
from jax.experimental import pallas as pl
from jax.experimental.pallas import tpu as pltpu

_MIB = 1024 * 1024


# ---------------------------------------------------------------------------
# One-time parameter preparation (hoisted out of the per-call path)
# ---------------------------------------------------------------------------
def prepare_lstm_params(w, u, b, mxu_dtype=jnp.bfloat16):
    """Permute gate columns (i,f,g,o) -> (i,f,o,g), pre-scale the i/f/o columns
    by 0.5 (so sigmoid(z) == 0.5*tanh(gates)+0.5 with a single EUP pass), and
    cast W/U to the MXU input dtype.  Call once and cache the result."""
    h4 = w.shape[-1]
    h = h4 // 4
    b = jnp.asarray(b).reshape(1, h4)

    def permute(p):   # (i, f, g, o) -> (i, f, o, g)
        return jnp.concatenate(
            [p[..., :2 * h], p[..., 3 * h:], p[..., 2 * h:3 * h]], axis=-1)

    def prescale(p):  # scale the (now leading) i/f/o columns by 0.5 (exact)
        return jnp.concatenate([p[..., :3 * h] * 0.5, p[..., 3 * h:]], axis=-1)

    w_p = prescale(permute(w)).astype(mxu_dtype)
    u_p = prescale(permute(u)).astype(mxu_dtype)
    b_p = prescale(permute(b)).astype(jnp.float32)   # folded into gx in f32
    return w_p, u_p, b_p


# ---------------------------------------------------------------------------
# VMEM-budget-driven tile selection
# ---------------------------------------------------------------------------
def _choose_row_tile(rows, l, h4, bpe_in, bpe_out,
                     budget_bytes=16 * _MIB, max_rows=2048):
    """Largest row tile (multiple of 8 dividing `rows`) whose double-buffered
    input + output blocks fit the VMEM budget."""
    per_row = 2 * (l * bpe_in + h4 * bpe_out)
    cap = min(rows, max_rows, max(8, budget_bytes // max(per_row, 1)))
    t = (cap // 8) * 8
    while t >= 8:
        if rows % t == 0:
            return t
        t -= 8
    return rows   # fallback: no multiple-of-8 divisor -> single block


def _choose_time_chunk(seq, b_shard, h4, bpe_gx,
                       budget_bytes=12 * _MIB, max_chunk=128):
    """Largest time chunk dividing `seq` whose double-buffered gx block fits."""
    per_t = 2 * b_shard * h4 * bpe_gx
    cap = int(min(seq, max_chunk, max(1, budget_bytes // max(per_t, 1))))
    for t in range(cap, 0, -1):
        if seq % t == 0:
            return t
    return 1


def _default_batch_shards(batch):
    """Shard the recurrence over both TensorCores on megacore parts."""
    if batch % 16 != 0:       # keep (8,128)-aligned per-shard blocks
        return 1
    try:
        kind = jax.devices()[0].device_kind.lower()
    except Exception:
        return 1
    return 2 if any(s in kind for s in ("v7", "v5p", "v4")) else 1


def _vmem_limit(estimate_bytes):
    return int(min(64 * _MIB, max(32 * _MIB, estimate_bytes * 3 // 2)))


# ---------------------------------------------------------------------------
# Kernel 1: hoisted input projection  gx = x @ W + b   (parallel grid)
# ---------------------------------------------------------------------------
def _input_proj_kernel(x_ref, w_ref, b_ref, gx_ref):
    # x_ref: (RT, L) mxu_dtype, w_ref: (L, 4H) mxu_dtype, b_ref: (1, 4H) f32
    g = jnp.dot(x_ref[...], w_ref[...], preferred_element_type=jnp.float32)
    gx_ref[...] = (g + b_ref[...]).astype(gx_ref.dtype)


# ---------------------------------------------------------------------------
# Kernel 2: sequential recurrence over time chunks of precomputed gates
# ---------------------------------------------------------------------------
def _lstm_recurrent_kernel(gx_ref, u_ref, h_out_ref, c_out_ref, h_sc, c_sc,
                           *, hidden, chunk, mxu_dtype):
    # gx_ref: (T, Bs, 4H) time-major precomputed gates; u_ref: (H, 4H) resident
    k = pl.program_id(1)
    H = hidden

    @pl.when(k == 0)
    def _():
        h_sc[...] = jnp.zeros_like(h_sc)
        c_sc[...] = jnp.zeros_like(c_sc)

    u = u_ref[...]   # resident in VMEM (constant index map)

    def step(t, carry):
        h, c = carry
        # contiguous (Bs, 4H) tile (time-major) + tiny recurrent matmul
        gates = gx_ref[t].astype(jnp.float32) + jnp.dot(
            h.astype(mxu_dtype), u, preferred_element_type=jnp.float32)
        # Columns are pre-permuted to (i, f, o, g) and i/f/o are pre-scaled by
        # 0.5, so ONE tanh over 4H yields both the sigmoids and tanh(g).
        t_all = jnp.tanh(gates)
        s_all = 0.5 * t_all + 0.5
        i_g = s_all[:, :H]
        f_g = s_all[:, H:2 * H]
        o_g = s_all[:, 2 * H:3 * H]
        g_g = t_all[:, 3 * H:]
        c = f_g * c + i_g * g_g
        h = o_g * jnp.tanh(c)
        return h, c

    # Bounded-unroll loop: LLO visibility without unbounded vreg live ranges.
    h, c = lax.fori_loop(0, chunk, step, (h_sc[...], c_sc[...]),
                         unroll=min(8, chunk))
    h_sc[...] = h
    c_sc[...] = c

    # Single lane-dense output store at the very end of the sequence.
    @pl.when(k == pl.num_programs(1) - 1)
    def _():
        h_out_ref[...] = h.astype(h_out_ref.dtype)
        c_out_ref[...] = c.astype(c_out_ref.dtype)


# ---------------------------------------------------------------------------
# Public wrappers
# ---------------------------------------------------------------------------
def lstm_encoder_prepared(x, w_p, u_p, b_p, *, mxu_dtype=jnp.bfloat16,
                          batch_shards=None):
    """x: (batch, seq, latent) with params from prepare_lstm_params.
    Returns (h, c), each (batch, hidden), matching PyTorch LSTM_encoder."""
    B, S, L = x.shape
    H4 = w_p.shape[1]
    H = H4 // 4
    assert u_p.shape == (H, H4) and b_p.shape == (1, H4)

    gx_dtype = mxu_dtype                         # bf16 halves gx HBM traffic
    bpe_in = jnp.dtype(mxu_dtype).itemsize
    bpe_gx = jnp.dtype(gx_dtype).itemsize

    # ---- Stage 1: time-major hoisted input projection gx = x @ W + b --------
    rows = S * B
    # time-major rows so stage 2 reads a contiguous (B, 4H) tile per timestep;
    # x is the smallest tensor so this single extra pass is cheap.
    x_tm = jnp.swapaxes(x, 0, 1).astype(mxu_dtype).reshape(rows, L)

    RT = _choose_row_tile(rows, L, H4, bpe_in, bpe_gx)
    est1 = (2 * RT * L * bpe_in + 2 * RT * H4 * bpe_gx
            + 2 * L * H4 * bpe_in + 2 * H4 * 4)

    gx = pl.pallas_call(
        _input_proj_kernel,
        out_shape=jax.ShapeDtypeStruct((rows, H4), gx_dtype),
        grid_spec=pltpu.PrefetchScalarGridSpec(
            num_scalar_prefetch=0,
            grid=(rows // RT,),
            in_specs=[
                pl.BlockSpec((RT, L), lambda r: (r, 0)),    # x rows (time-major)
                pl.BlockSpec((L, H4), lambda r: (0, 0)),    # W (resident)
                pl.BlockSpec((1, H4), lambda r: (0, 0)),    # b (resident)
            ],
            out_specs=pl.BlockSpec((RT, H4), lambda r: (r, 0)),
        ),
        compiler_params=pltpu.CompilerParams(
            dimension_semantics=("parallel",),
            vmem_limit_bytes=_vmem_limit(est1),
        ),
    )(x_tm, w_p, b_p).reshape(S, B, H4)          # free reshape -> (S, B, 4H)

    # ---- Stage 2: sequential recurrence over time chunks --------------------
    P = _default_batch_shards(B) if batch_shards is None else batch_shards
    assert B % P == 0
    Bs = B // P

    T = _choose_time_chunk(S, Bs, H4, bpe_gx)
    est2 = (2 * T * Bs * H4 * bpe_gx + 2 * H * H4 * bpe_in
            + 2 * Bs * H * 4 + 4 * Bs * H * x.dtype.itemsize)

    kernel = functools.partial(_lstm_recurrent_kernel, hidden=H, chunk=T,
                               mxu_dtype=mxu_dtype)

    h, c = pl.pallas_call(
        kernel,
        out_shape=(
            jax.ShapeDtypeStruct((B, H), x.dtype),
            jax.ShapeDtypeStruct((B, H), x.dtype),
        ),
        grid_spec=pltpu.PrefetchScalarGridSpec(
            num_scalar_prefetch=0,
            grid=(P, S // T),
            in_specs=[
                pl.BlockSpec((T, Bs, H4), lambda p, k: (k, p, 0)),  # gate chunk
                pl.BlockSpec((H, H4), lambda p, k: (0, 0)),         # U (resident)
            ],
            out_specs=(
                pl.BlockSpec((Bs, H), lambda p, k: (p, 0)),
                pl.BlockSpec((Bs, H), lambda p, k: (p, 0)),
            ),
            scratch_shapes=[
                pltpu.VMEM((Bs, H), jnp.float32),   # h state (f32)
                pltpu.VMEM((Bs, H), jnp.float32),   # c state (f32)
            ],
        ),
        compiler_params=pltpu.CompilerParams(
            dimension_semantics=("parallel", "arbitrary"),
            vmem_limit_bytes=_vmem_limit(est2),
        ),
    )(gx, u_p)
    return h, c


def lstm_encoder(x, w, u, b, *, mxu_dtype=jnp.bfloat16, batch_shards=None):
    """Convenience wrapper: parameter prep + run.  For repeated calls, call
    prepare_lstm_params once and use lstm_encoder_prepared directly."""
    w_p, u_p, b_p = prepare_lstm_params(w, u, b, mxu_dtype=mxu_dtype)
    return lstm_encoder_prepared(x, w_p, u_p, b_p, mxu_dtype=mxu_dtype,
                                 batch_shards=batch_shards)


# ---------------------------------------------------------------------------
# Pure-JAX reference matching the PyTorch loop (original i, f, g, o layout)
# ---------------------------------------------------------------------------
def lstm_encoder_ref(x, w, u, b):
    B, S, L = x.shape
    H = w.shape[1] // 4
    hi = jax.lax.Precision.HIGHEST
    h = jnp.zeros((B, H), jnp.float32)
    c = jnp.zeros((B, H), jnp.float32)
    b = b.reshape(1, -1)
    for t in range(S):
        z = (jnp.dot(x[:, t, :], w, precision=hi)
             + jnp.dot(h, u, precision=hi) + b)
        i_g = jax.nn.sigmoid(z[:, 0 * H:1 * H])
        f_g = jax.nn.sigmoid(z[:, 1 * H:2 * H])
        g_g = jnp.tanh(z[:, 2 * H:3 * H])
        o_g = jax.nn.sigmoid(z[:, 3 * H:4 * H])
        c = f_g * c + i_g * g_g
        h = o_g * jnp.tanh(c)
    return h, c


if __name__ == "__main__":
    # Small, forward-consistent shapes: batch=2, seq=8, latent=8, hidden=32.
    B, S, L, H = 2, 8, 8, 32

    key = jax.random.PRNGKey(0)
    kx, kw, ku, kb = jax.random.split(key, 4)

    x = jax.random.normal(kx, (B, S, L), dtype=jnp.float32)
    # Deterministic synthetic parameters (LSTM_cell: input->4H, hidden->4H, bias 4H).
    w = jax.random.normal(kw, (L, 4 * H), dtype=jnp.float32) * 0.1
    u = jax.random.normal(ku, (H, 4 * H), dtype=jnp.float32) * 0.1
    b = jax.random.normal(kb, (1, 4 * H), dtype=jnp.float32) * 0.1

    h_ref, c_ref = lstm_encoder_ref(x, w, u, b)

    # --- f32-precision path: structural / numerical check vs. reference ------
    params_f32 = prepare_lstm_params(w, u, b, mxu_dtype=jnp.float32)
    run_f32 = jax.jit(functools.partial(lstm_encoder_prepared,
                                        mxu_dtype=jnp.float32))
    h32, c32 = run_f32(x, *params_f32)
    jax.block_until_ready((h32, c32))
    # tolerance bounded by MXU f32-emulation vs XLA matmul differences
    assert jnp.allclose(h32, h_ref, atol=2e-3, rtol=2e-3), "h mismatch (f32)"
    assert jnp.allclose(c32, c_ref, atol=2e-3, rtol=2e-3), "c mismatch (f32)"

    # --- default performance path: bf16 MXU inputs / bf16 gx, f32 accum ------
    params_bf16 = prepare_lstm_params(w, u, b, mxu_dtype=jnp.bfloat16)
    run_bf16 = jax.jit(functools.partial(lstm_encoder_prepared,
                                         mxu_dtype=jnp.bfloat16))
    hbf, cbf = run_bf16(x, *params_bf16)
    jax.block_until_ready((hbf, cbf))
    assert jnp.allclose(hbf, h_ref, atol=3e-2, rtol=5e-2), "h mismatch (bf16)"
    assert jnp.allclose(cbf, c_ref, atol=3e-2, rtol=5e-2), "c mismatch (bf16)"

    print("KERNEL_OK")
</pallas_src>

<mosaic_0001>
module attributes {stable_mosaic.version = 11 : i64} {
  func.func @_input_proj_kernel(%arg0: i32, %arg1: memref<16x8xf32, #tpu.memory_space<vmem>>, %arg2: memref<8x128xf32, #tpu.memory_space<vmem>>, %arg3: memref<1x128xf32, #tpu.memory_space<vmem>>, %arg4: memref<16x128xf32, #tpu.memory_space<vmem>>) attributes {dimension_semantics = [#tpu.dimension_semantics<parallel>], iteration_bounds = array<i64: 1>, scalar_prefetch = 0 : i64, scratch_operands = 0 : i64, tpu.core_type = #tpu.core_type<tc>, window_params = [{transform_indices = @transform_0, window_bounds = array<i64: 16, 8>}, {pipeline_mode = #tpu.pipeline_mode<synchronous>, transform_indices = @transform_1, window_bounds = array<i64: 8, 128>}, {pipeline_mode = #tpu.pipeline_mode<synchronous>, transform_indices = @transform_2, window_bounds = array<i64: 1, 128>}, {transform_indices = @transform_3, window_bounds = array<i64: 16, 128>}]} {
    %c0 = arith.constant 0 : index
    %c0_0 = arith.constant 0 : index
    %0 = vector.load %arg1[%c0, %c0_0] : memref<16x8xf32, #tpu.memory_space<vmem>>, vector<16x8xf32>
    %c0_1 = arith.constant 0 : index
    %c0_2 = arith.constant 0 : index
    %1 = vector.load %arg2[%c0_1, %c0_2] : memref<8x128xf32, #tpu.memory_space<vmem>>, vector<8x128xf32>
    %cst = arith.constant dense<0.000000e+00> : vector<16x128xf32>
    %2 = tpu.matmul %0, %1, %cst {dimension_numbers = #tpu.dot_dimension_numbers<[1], [0], [0], [1], [0, 0, 1, 1], [], []>} : vector<16x8xf32>, vector<8x128xf32>, vector<16x128xf32> -> vector<16x128xf32>
    %c0_3 = arith.constant 0 : index
    %c0_4 = arith.constant 0 : index
    %3 = vector.load %arg3[%c0_3, %c0_4] : memref<1x128xf32, #tpu.memory_space<vmem>>, vector<1x128xf32>
    %4 = vector.broadcast %3 : vector<1x128xf32> to vector<16x128xf32>
    %5 = arith.addf %2, %4 : vector<16x128xf32>
    %c0_5 = arith.constant 0 : index
    %c0_6 = arith.constant 0 : index
    %6 = vector.load %arg4[%c0_5, %c0_6] : memref<16x128xf32, #tpu.memory_space<vmem>>, vector<16x128xf32>
    tpu.vector_store %arg4[%c0_5, %c0_6], %5 {strides = array<i32>} : memref<16x128xf32, #tpu.memory_space<vmem>>, vector<16x128xf32>,
    return
  }
  func.func @transform_0(%arg0: i32) -> (i32, i32) {
    %c0_i32 = arith.constant 0 : i32
    %c0_i32_0 = arith.constant 0 : i32
    return %arg0, %c0_i32 : i32, i32
  }
  func.func @transform_1(%arg0: i32) -> (i32, i32) {
    %c0_i32 = arith.constant 0 : i32
    %c0_i32_0 = arith.constant 0 : i32
    %c0_i32_1 = arith.constant 0 : i32
    return %c0_i32, %c0_i32_0 : i32, i32
  }
  func.func @transform_2(%arg0: i32) -> (i32, i32) {
    %c0_i32 = arith.constant 0 : i32
    %c0_i32_0 = arith.constant 0 : i32
    %c0_i32_1 = arith.constant 0 : i32
    return %c0_i32, %c0_i32_0 : i32, i32
  }
  func.func @transform_3(%arg0: i32) -> (i32, i32) {
    %c0_i32 = arith.constant 0 : i32
    %c0_i32_0 = arith.constant 0 : i32
    return %arg0, %c0_i32 : i32, i32
  }
}

module attributes {stable_mosaic.version = 11 : i64} {
  func.func @_lstm_recurrent_kernel(%arg0: i32, %arg1: i32, %arg2: memref<8x2x128xf32, #tpu.memory_space<vmem>>, %arg3: memref<32x128xf32, #tpu.memory_space<vmem>>, %arg4: memref<2x32xf32, #tpu.memory_space<vmem>>, %arg5: memref<2x32xf32, #tpu.memory_space<vmem>>, %arg6: memref<2x32xf32, #tpu.memory_space<vmem>>, %arg7: memref<2x32xf32, #tpu.memory_space<vmem>>) attributes {dimension_semantics = [#tpu.dimension_semantics<parallel>, #tpu.dimension_semantics<arbitrary>], iteration_bounds = array<i64: 1, 1>, scalar_prefetch = 0 : i64, scratch_operands = 2 : i64, tpu.core_type = #tpu.core_type<tc>, window_params = [{transform_indices = @transform_0, window_bounds = array<i64: 8, 2, 128>}, {pipeline_mode = #tpu.pipeline_mode<synchronous>, transform_indices = @transform_1, window_bounds = array<i64: 32, 128>}, {transform_indices = @transform_2, window_bounds = array<i64: 2, 32>}, {transform_indices = @transform_3, window_bounds = array<i64: 2, 32>}]} {
    %c0_i32 = arith.constant 0 : i32
    %0 = arith.cmpi eq, %arg1, %c0_i32 : i32
    %1 = arith.extui %0 : i1 to i32
    %c0_i32_0 = arith.constant 0 : i32
    %2 = arith.cmpi ne, %1, %c0_i32_0 : i32
    scf.if %2 {
      %cst_52 = arith.constant 0.000000e+00 : f32
      %163 = vector.broadcast %cst_52 : f32 to vector<2x32xf32>
      %c0_53 = arith.constant 0 : index
      %c0_54 = arith.constant 0 : index
      %164 = vector.load %arg6[%c0_53, %c0_54] : memref<2x32xf32, #tpu.memory_space<vmem>>, vector<2x32xf32>
      tpu.vector_store %arg6[%c0_53, %c0_54], %163 {strides = array<i32>} : memref<2x32xf32, #tpu.memory_space<vmem>>, vector<2x32xf32>,
      %cst_55 = arith.constant 0.000000e+00 : f32
      %165 = vector.broadcast %cst_55 : f32 to vector<2x32xf32>
      %c0_56 = arith.constant 0 : index
      %c0_57 = arith.constant 0 : index
      %166 = vector.load %arg7[%c0_56, %c0_57] : memref<2x32xf32, #tpu.memory_space<vmem>>, vector<2x32xf32>
      tpu.vector_store %arg7[%c0_56, %c0_57], %165 {strides = array<i32>} : memref<2x32xf32, #tpu.memory_space<vmem>>, vector<2x32xf32>,
    } else {
    }
    %c0 = arith.constant 0 : index
    %c0_1 = arith.constant 0 : index
    %3 = vector.load %arg3[%c0, %c0_1] : memref<32x128xf32, #tpu.memory_space<vmem>>, vector<32x128xf32>
    %c0_2 = arith.constant 0 : index
    %c0_3 = arith.constant 0 : index
    %4 = vector.load %arg6[%c0_2, %c0_3] : memref<2x32xf32, #tpu.memory_space<vmem>>, vector<2x32xf32>
    %c0_4 = arith.constant 0 : index
    %c0_5 = arith.constant 0 : index
    %5 = vector.load %arg7[%c0_4, %c0_5] : memref<2x32xf32, #tpu.memory_space<vmem>>, vector<2x32xf32>
    %c0_i32_6 = arith.constant 0 : i32
    %6 = arith.index_cast %c0_i32_6 : i32 to index
    %c0_7 = arith.constant 0 : index
    %c0_8 = arith.constant 0 : index
    %7 = vector.load %arg2[%6, %c0_7, %c0_8] : memref<8x2x128xf32, #tpu.memory_space<vmem>>, vector<1x2x128xf32>
    %8 = vector.shape_cast %7 : vector<1x2x128xf32> to vector<2x128xf32>
    %cst = arith.constant dense<0.000000e+00> : vector<2x128xf32>
    %9 = tpu.matmul %4, %3, %cst {dimension_numbers = #tpu.dot_dimension_numbers<[1], [0], [0], [1], [0, 0, 1, 1], [], []>} : vector<2x32xf32>, vector<32x128xf32>, vector<2x128xf32> -> vector<2x128xf32>
    %10 = arith.addf %8, %9 : vector<2x128xf32>
    %11 = math.tanh %10 : vector<2x128xf32>
    %cst_9 = arith.constant 5.000000e-01 : f32
    %12 = vector.broadcast %cst_9 : f32 to vector<2x128xf32>
    %13 = arith.mulf %12, %11 : vector<2x128xf32>
    %cst_10 = arith.constant 5.000000e-01 : f32
    %14 = vector.broadcast %cst_10 : f32 to vector<2x128xf32>
    %15 = arith.addf %13, %14 : vector<2x128xf32>
    %16 = vector.extract_strided_slice %15 {offsets = [0, 0], sizes = [2, 32], strides = [1, 1]} : vector<2x128xf32> to vector<2x32xf32>
    %17 = vector.extract_strided_slice %15 {offsets = [0, 32], sizes = [2, 32], strides = [1, 1]} : vector<2x128xf32> to vector<2x32xf32>
    %18 = vector.extract_strided_slice %15 {offsets = [0, 64], sizes = [2, 32], strides = [1, 1]} : vector<2x128xf32> to vector<2x32xf32>
    %19 = vector.extract_strided_slice %11 {offsets = [0, 96], sizes = [2, 32], strides = [1, 1]} : vector<2x128xf32> to vector<2x32xf32>
    %20 = arith.mulf %17, %5 : vector<2x32xf32>
    %21 = arith.mulf %16, %19 : vector<2x32xf32>
    %22 = arith.addf %20, %21 : vector<2x32xf32>
    %23 = math.tanh %22 : vector<2x32xf32>
    %24 = arith.mulf %18, %23 : vector<2x32xf32>
    %c1_i32 = arith.constant 1 : i32
    %25 = arith.index_cast %c1_i32 : i32 to index
    %c0_11 = arith.constant 0 : index
    %c0_12 = arith.constant 0 : index
    %26 = vector.load %arg2[%25, %c0_11, %c0_12] : memref<8x2x128xf32, #tpu.memory_space<vmem>>, vector<1x2x128xf32>
    %27 = vector.shape_cast %26 : vector<1x2x128xf32> to vector<2x128xf32>
    %cst_13 = arith.constant dense<0.000000e+00> : vector<2x128xf32>
    %28 = tpu.matmul %24, %3, %cst_13 {dimension_numbers = #tpu.dot_dimension_numbers<[1], [0], [0], [1], [0, 0, 1, 1], [], []>} : vector<2x32xf32>, vector<32x128xf32>, vector<2x128xf32> -> vector<2x128xf32>
    %29 = arith.addf %27, %28 : vector<2x128xf32>
    %30 = math.tanh %29 : vector<2x128xf32>
    %cst_14 = arith.constant 5.000000e-01 : f32
    %31 = vector.broadcast %cst_14 : f32 to vector<2x128xf32>
    %32 = arith.mulf %31, %30 : vector<2x128xf32>
    %cst_15 = arith.constant 5.000000e-01 : f32
    %33 = vector.broadcast %cst_15 : f32 to vector<2x128xf32>
    %34 = arith.addf %32, %33 : vector<2x128xf32>
    %35 = vector.extract_strided_slice %34 {offsets = [0, 0], sizes = [2, 32], strides = [1, 1]} : vector<2x128xf32> to vector<2x32xf32>
    %36 = vector.extract_strided_slice %34 {offsets = [0, 32], sizes = [2, 32], strides = [1, 1]} : vector<2x128xf32> to vector<2x32xf32>
    %37 = vector.extract_strided_slice %34 {offsets = [0, 64], sizes = [2, 32], strides = [1, 1]} : vector<2x128xf32> to vector<2x32xf32>
    %38 = vector.extract_strided_slice %30 {offsets = [0, 96], sizes = [2, 32], strides = [1, 1]} : vector<2x128xf32> to vector<2x32xf32>
    %39 = arith.mulf %36, %22 : vector<2x32xf32>
    %40 = arith.mulf %35, %38 : vector<2x32xf32>
    %41 = arith.addf %39, %40 : vector<2x32xf32>
    %42 = math.tanh %41 : vector<2x32xf32>
    %43 = arith.mulf %37, %42 : vector<2x32xf32>
    %c2_i32 = arith.constant 2 : i32
    %44 = arith.index_cast %c2_i32 : i32 to index
    %c0_16 = arith.constant 0 : index
    %c0_17 = arith.constant 0 : index
    %45 = vector.load %arg2[%44, %c0_16, %c0_17] : memref<8x2x128xf32, #tpu.memory_space<vmem>>, vector<1x2x128xf32>
    %46 = vector.shape_cast %45 : vector<1x2x128xf32> to vector<2x128xf32>
    %cst_18 = arith.constant dense<0.000000e+00> : vector<2x128xf32>
    %47 = tpu.matmul %43, %3, %cst_18 {dimension_numbers = #tpu.dot_dimension_numbers<[1], [0], [0], [1], [0, 0, 1, 1], [], []>} : vector<2x32xf32>, vector<32x128xf32>, vector<2x128xf32> -> vector<2x128xf32>
    %48 = arith.addf %46, %47 : vector<2x128xf32>
    %49 = math.tanh %48 : vector<2x128xf32>
    %cst_19 = arith.constant 5.000000e-01 : f32
    %50 = vector.broadcast %cst_19 : f32 to vector<2x128xf32>
    %51 = arith.mulf %50, %49 : vector<2x128xf32>
    %cst_20 = arith.constant 5.000000e-01 : f32
    %52 = vector.broadcast %cst_20 : f32 to vector<2x128xf32>
    %53 = arith.addf %51, %52 : vector<2x128xf32>
    %54 = vector.extract_strided_slice %53 {offsets = [0, 0], sizes = [2, 32], strides = [1, 1]} : vector<2x128xf32> to vector<2x32xf32>
    %55 = vector.extract_strided_slice %53 {offsets = [0, 32], sizes = [2, 32], strides = [1, 1]} : vector<2x128xf32> to vector<2x32xf32>
    %56 = vector.extract_strided_slice %53 {offsets = [0, 64], sizes = [2, 32], strides = [1, 1]} : vector<2x128xf32> to vector<2x32xf32>
    %57 = vector.extract_strided_slice %49 {offsets = [0, 96], sizes = [2, 32], strides = [1, 1]} : vector<2x128xf32> to vector<2x32xf32>
    %58 = arith.mulf %55, %41 : vector<2x32xf32>
    %59 = arith.mulf %54, %57 : vector<2x32xf32>
    %60 = arith.addf %58, %59 : vector<2x32xf32>
    %61 = math.tanh %60 : vector<2x32xf32>
    %62 = arith.mulf %56, %61 : vector<2x32xf32>
    %c3_i32 = arith.constant 3 : i32
    %63 = arith.index_cast %c3_i32 : i32 to index
    %c0_21 = arith.constant 0 : index
    %c0_22 = arith.constant 0 : index
    %64 = vector.load %arg2[%63, %c0_21, %c0_22] : memref<8x2x128xf32, #tpu.memory_space<vmem>>, vector<1x2x128xf32>
    %65 = vector.shape_cast %64 : vector<1x2x128xf32> to vector<2x128xf32>
    %cst_23 = arith.constant dense<0.000000e+00> : vector<2x128xf32>
    %66 = tpu.matmul %62, %3, %cst_23 {dimension_numbers = #tpu.dot_dimension_numbers<[1], [0], [0], [1], [0, 0, 1, 1], [], []>} : vector<2x32xf32>, vector<32x128xf32>, vector<2x128xf32> -> vector<2x128xf32>
    %67 = arith.addf %65, %66 : vector<2x128xf32>
    %68 = math.tanh %67 : vector<2x128xf32>
    %cst_24 = arith.constant 5.000000e-01 : f32
    %69 = vector.broadcast %cst_24 : f32 to vector<2x128xf32>
    %70 = arith.mulf %69, %68 : vector<2x128xf32>
    %cst_25 = arith.constant 5.000000e-01 : f32
    %71 = vector.broadcast %cst_25 : f32 to vector<2x128xf32>
    %72 = arith.addf %70, %71 : vector<2x128xf32>
    %73 = vector.extract_strided_slice %72 {offsets = [0, 0], sizes = [2, 32], strides = [1, 1]} : vector<2x128xf32> to vector<2x32xf32>
    %74 = vector.extract_strided_slice %72 {offsets = [0, 32], sizes = [2, 32], strides = [1, 1]} : vector<2x128xf32> to vector<2x32xf32>
    %75 = vector.extract_strided_slice %72 {offsets = [0, 64], sizes = [2, 32], strides = [1, 1]} : vector<2x128xf32> to vector<2x32xf32>
    %76 = vector.extract_strided_slice %68 {offsets = [0, 96], sizes = [2, 32], strides = [1, 1]} : vector<2x128xf32> to vector<2x32xf32>
    %77 = arith.mulf %74, %60 : vector<2x32xf32>
    %78 = arith.mulf %73, %76 : vector<2x32xf32>
    %79 = arith.addf %77, %78 : vector<2x32xf32>
    %80 = math.tanh %79 : vector<2x32xf32>
    %81 = arith.mulf %75, %80 : vector<2x32xf32>
    %c4_i32 = arith.constant 4 : i32
    %82 = arith.index_cast %c4_i32 : i32 to index
    %c0_26 = arith.constant 0 : index
    %c0_27 = arith.constant 0 : index
    %83 = vector.load %arg2[%82, %c0_26, %c0_27] : memref<8x2x128xf32, #tpu.memory_space<vmem>>, vector<1x2x128xf32>
    %84 = vector.shape_cast %83 : vector<1x2x128xf32> to vector<2x128xf32>
    %cst_28 = arith.constant dense<0.000000e+00> : vector<2x128xf32>
    %85 = tpu.matmul %81, %3, %cst_28 {dimension_numbers = #tpu.dot_dimension_numbers<[1], [0], [0], [1], [0, 0, 1, 1], [], []>} : vector<2x32xf32>, vector<32x128xf32>, vector<2x128xf32> -> vector<2x128xf32>
    %86 = arith.addf %84, %85 : vector<2x128xf32>
    %87 = math.tanh %86 : vector<2x128xf32>
    %cst_29 = arith.constant 5.000000e-01 : f32
    %88 = vector.broadcast %cst_29 : f32 to vector<2x128xf32>
    %89 = arith.mulf %88, %87 : vector<2x128xf32>
    %cst_30 = arith.constant 5.000000e-01 : f32
    %90 = vector.broadcast %cst_30 : f32 to vector<2x128xf32>
    %91 = arith.addf %89, %90 : vector<2x128xf32>
    %92 = vector.extract_strided_slice %91 {offsets = [0, 0], sizes = [2, 32], strides = [1, 1]} : vector<2x128xf32> to vector<2x32xf32>
    %93 = vector.extract_strided_slice %91 {offsets = [0, 32], sizes = [2, 32], strides = [1, 1]} : vector<2x128xf32> to vector<2x32xf32>
    %94 = vector.extract_strided_slice %91 {offsets = [0, 64], sizes = [2, 32], strides = [1, 1]} : vector<2x128xf32> to vector<2x32xf32>
    %95 = vector.extract_strided_slice %87 {offsets = [0, 96], sizes = [2, 32], strides = [1, 1]} : vector<2x128xf32> to vector<2x32xf32>
    %96 = arith.mulf %93, %79 : vector<2x32xf32>
    %97 = arith.mulf %92, %95 : vector<2x32xf32>
    %98 = arith.addf %96, %97 : vector<2x32xf32>
    %99 = math.tanh %98 : vector<2x32xf32>
    %100 = arith.mulf %94, %99 : vector<2x32xf32>
    %c5_i32 = arith.constant 5 : i32
    %101 = arith.index_cast %c5_i32 : i32 to index
    %c0_31 = arith.constant 0 : index
    %c0_32 = arith.constant 0 : index
    %102 = vector.load %arg2[%101, %c0_31, %c0_32] : memref<8x2x128xf32, #tpu.memory_space<vmem>>, vector<1x2x128xf32>
    %103 = vector.shape_cast %102 : vector<1x2x128xf32> to vector<2x128xf32>
    %cst_33 = arith.constant dense<0.000000e+00> : vector<2x128xf32>
    %104 = tpu.matmul %100, %3, %cst_33 {dimension_numbers = #tpu.dot_dimension_numbers<[1], [0], [0], [1], [0, 0, 1, 1], [], []>} : vector<2x32xf32>, vector<32x128xf32>, vector<2x128xf32> -> vector<2x128xf32>
    %105 = arith.addf %103, %104 : vector<2x128xf32>
    %106 = math.tanh %105 : vector<2x128xf32>
    %cst_34 = arith.constant 5.000000e-01 : f32
    %107 = vector.broadcast %cst_34 : f32 to vector<2x128xf32>
    %108 = arith.mulf %107, %106 : vector<2x128xf32>
    %cst_35 = arith.constant 5.000000e-01 : f32
    %109 = vector.broadcast %cst_35 : f32 to vector<2x128xf32>
    %110 = arith.addf %108, %109 : vector<2x128xf32>
    %111 = vector.extract_strided_slice %110 {offsets = [0, 0], sizes = [2, 32], strides = [1, 1]} : vector<2x128xf32> to vector<2x32xf32>
    %112 = vector.extract_strided_slice %110 {offsets = [0, 32], sizes = [2, 32], strides = [1, 1]} : vector<2x128xf32> to vector<2x32xf32>
    %113 = vector.extract_strided_slice %110 {offsets = [0, 64], sizes = [2, 32], strides = [1, 1]} : vector<2x128xf32> to vector<2x32xf32>
    %114 = vector.extract_strided_slice %106 {offsets = [0, 96], sizes = [2, 32], strides = [1, 1]} : vector<2x128xf32> to vector<2x32xf32>
    %115 = arith.mulf %112, %98 : vector<2x32xf32>
    %116 = arith.mulf %111, %114 : vector<2x32xf32>
    %117 = arith.addf %115, %116 : vector<2x32xf32>
    %118 = math.tanh %117 : vector<2x32xf32>
    %119 = arith.mulf %113, %118 : vector<2x32xf32>
    %c6_i32 = arith.constant 6 : i32
    %120 = arith.index_cast %c6_i32 : i32 to index
    %c0_36 = arith.constant 0 : index
    %c0_37 = arith.constant 0 : index
    %121 = vector.load %arg2[%120, %c0_36, %c0_37] : memref<8x2x128xf32, #tpu.memory_space<vmem>>, vector<1x2x128xf32>
    %122 = vector.shape_cast %121 : vector<1x2x128xf32> to vector<2x128xf32>
    %cst_38 = arith.constant dense<0.000000e+00> : vector<2x128xf32>
    %123 = tpu.matmul %119, %3, %cst_38 {dimension_numbers = #tpu.dot_dimension_numbers<[1], [0], [0], [1], [0, 0, 1, 1], [], []>} : vector<2x32xf32>, vector<32x128xf32>, vector<2x128xf32> -> vector<2x128xf32>
    %124 = arith.addf %122, %123 : vector<2x128xf32>
    %125 = math.tanh %124 : vector<2x128xf32>
    %cst_39 = arith.constant 5.000000e-01 : f32
    %126 = vector.broadcast %cst_39 : f32 to vector<2x128xf32>
    %127 = arith.mulf %126, %125 : vector<2x128xf32>
    %cst_40 = arith.constant 5.000000e-01 : f32
    %128 = vector.broadcast %cst_40 : f32 to vector<2x128xf32>
    %129 = arith.addf %127, %128 : vector<2x128xf32>
    %130 = vector.extract_strided_slice %129 {offsets = [0, 0], sizes = [2, 32], strides = [1, 1]} : vector<2x128xf32> to vector<2x32xf32>
    %131 = vector.extract_strided_slice %129 {offsets = [0, 32], sizes = [2, 32], strides = [1, 1]} : vector<2x128xf32> to vector<2x32xf32>
    %132 = vector.extract_strided_slice %129 {offsets = [0, 64], sizes = [2, 32], strides = [1, 1]} : vector<2x128xf32> to vector<2x32xf32>
    %133 = vector.extract_strided_slice %125 {offsets = [0, 96], sizes = [2, 32], strides = [1, 1]} : vector<2x128xf32> to vector<2x32xf32>
    %134 = arith.mulf %131, %117 : vector<2x32xf32>
    %135 = arith.mulf %130, %133 : vector<2x32xf32>
    %136 = arith.addf %134, %135 : vector<2x32xf32>
    %137 = math.tanh %136 : vector<2x32xf32>
    %138 = arith.mulf %132, %137 : vector<2x32xf32>
    %c7_i32 = arith.constant 7 : i32
    %139 = arith.index_cast %c7_i32 : i32 to index
    %c0_41 = arith.constant 0 : index
    %c0_42 = arith.constant 0 : index
    %140 = vector.load %arg2[%139, %c0_41, %c0_42] : memref<8x2x128xf32, #tpu.memory_space<vmem>>, vector<1x2x128xf32>
    %141 = vector.shape_cast %140 : vector<1x2x128xf32> to vector<2x128xf32>
    %cst_43 = arith.constant dense<0.000000e+00> : vector<2x128xf32>
    %142 = tpu.matmul %138, %3, %cst_43 {dimension_numbers = #tpu.dot_dimension_numbers<[1], [0], [0], [1], [0, 0, 1, 1], [], []>} : vector<2x32xf32>, vector<32x128xf32>, vector<2x128xf32> -> vector<2x128xf32>
    %143 = arith.addf %141, %142 : vector<2x128xf32>
    %144 = math.tanh %143 : vector<2x128xf32>
    %cst_44 = arith.constant 5.000000e-01 : f32
    %145 = vector.broadcast %cst_44 : f32 to vector<2x128xf32>
    %146 = arith.mulf %145, %144 : vector<2x128xf32>
    %cst_45 = arith.constant 5.000000e-01 : f32
    %147 = vector.broadcast %cst_45 : f32 to vector<2x128xf32>
    %148 = arith.addf %146, %147 : vector<2x128xf32>
    %149 = vector.extract_strided_slice %148 {offsets = [0, 0], sizes = [2, 32], strides = [1, 1]} : vector<2x128xf32> to vector<2x32xf32>
    %150 = vector.extract_strided_slice %148 {offsets = [0, 32], sizes = [2, 32], strides = [1, 1]} : vector<2x128xf32> to vector<2x32xf32>
    %151 = vector.extract_strided_slice %148 {offsets = [0, 64], sizes = [2, 32], strides = [1, 1]} : vector<2x128xf32> to vector<2x32xf32>
    %152 = vector.extract_strided_slice %144 {offsets = [0, 96], sizes = [2, 32], strides = [1, 1]} : vector<2x128xf32> to vector<2x32xf32>
    %153 = arith.mulf %150, %136 : vector<2x32xf32>
    %154 = arith.mulf %149, %152 : vector<2x32xf32>
    %155 = arith.addf %153, %154 : vector<2x32xf32>
    %156 = math.tanh %155 : vector<2x32xf32>
    %157 = arith.mulf %151, %156 : vector<2x32xf32>
    %c8_i32 = arith.constant 8 : i32
    %c0_46 = arith.constant 0 : index
    %c0_47 = arith.constant 0 : index
    %158 = vector.load %arg6[%c0_46, %c0_47] : memref<2x32xf32, #tpu.memory_space<vmem>>, vector<2x32xf32>
    tpu.vector_store %arg6[%c0_46, %c0_47], %157 {strides = array<i32>} : memref<2x32xf32, #tpu.memory_space<vmem>>, vector<2x32xf32>,
    %c0_48 = arith.constant 0 : index
    %c0_49 = arith.constant 0 : index
    %159 = vector.load %arg7[%c0_48, %c0_49] : memref<2x32xf32, #tpu.memory_space<vmem>>, vector<2x32xf32>
    tpu.vector_store %arg7[%c0_48, %c0_49], %155 {strides = array<i32>} : memref<2x32xf32, #tpu.memory_space<vmem>>, vector<2x32xf32>,
    %c0_i32_50 = arith.constant 0 : i32
    %160 = arith.cmpi eq, %arg1, %c0_i32_50 : i32
    %161 = arith.extui %160 : i1 to i32
    %c0_i32_51 = arith.constant 0 : i32
    %162 = arith.cmpi ne, %161, %c0_i32_51 : i32
    scf.if %162 {
      %c0_52 = arith.constant 0 : index
      %c0_53 = arith.constant 0 : index
      %163 = vector.load %arg4[%c0_52, %c0_53] : memref<2x32xf32, #tpu.memory_space<vmem>>, vector<2x32xf32>
      tpu.vector_store %arg4[%c0_52, %c0_53], %157 {strides = array<i32>} : memref<2x32xf32, #tpu.memory_space<vmem>>, vector<2x32xf32>,
      %c0_54 = arith.constant 0 : index
      %c0_55 = arith.constant 0 : index
      %164 = vector.load %arg5[%c0_54, %c0_55] : memref<2x32xf32, #tpu.memory_space<vmem>>, vector<2x32xf32>
      tpu.vector_store %arg5[%c0_54, %c0_55], %155 {strides = array<i32>} : memref<2x32xf32, #tpu.memory_space<vmem>>, vector<2x32xf32>,
    } else {
    }
    return
  }
  func.func @transform_0(%arg0: i32, %arg1: i32) -> (i32, i32, i32) {
    %c0_i32 = arith.constant 0 : i32
    %c0_i32_0 = arith.constant 0 : i32
    return %arg1, %arg0, %c0_i32 : i32, i32, i32
  }
  func.func @transform_1(%arg0: i32, %arg1: i32) -> (i32, i32) {
    %c0_i32 = arith.constant 0 : i32
    %c0_i32_0 = arith.constant 0 : i32
    %c0_i32_1 = arith.constant 0 : i32
    return %c0_i32, %c0_i32_0 : i32, i32
  }
  func.func @transform_2(%arg0: i32, %arg1: i32) -> (i32, i32) {
    %c0_i32 = arith.constant 0 : i32
    %c0_i32_0 = arith.constant 0 : i32
    return %arg0, %c0_i32 : i32, i32
  }
  func.func @transform_3(%arg0: i32, %arg1: i32) -> (i32, i32) {
    %c0_i32 = arith.constant 0 : i32
    %c0_i32_0 = arith.constant 0 : i32
    return %arg0, %c0_i32 : i32, i32
  }
}

</mosaic_0001>

<llo_original>
// kernel: lstm_encoder_prepared.2
$region0: #{lstm_encoder_prepared.2}
  #allocation0 [shape = 'u32[]', space=smem, size = 0x4, offset = 0x4, fixed_abs, tag = 'smem constant byte address 0x4 - core index']
  #allocation1 [shape = 'u32[144,128]{1,0:T(1,128)}', space=vmem, size = 0x12000, scoped, tag = 'internal scratch']
  %s0 = inlined_call_operand.vmem [shape: f32[16,8], index: 0, kind: input, shape index: {}]
  %s1 = inlined_call_operand.vmem [shape: f32[8,128], index: 1, kind: input, shape index: {}]
  %s2 = inlined_call_operand.vmem [shape: f32[1,128], index: 2, kind: input, shape index: {}]
  %s3 = inlined_call_operand.vmem [shape: f32[16,128], index: 3, kind: output, shape index: {}]
  %s4 = sld [smem:[#allocation0]]
  $region22: #{lstm_encoder_prepared.2} parent=0
    _
  %s6 = ssub.s32 1, %s4
  %s7 = scalar_select 0, %s6, %s4
  // Predicated region
  $region2: #{lstm_encoder_prepared.2} parent=0 // pred_check
    _
  $region3: #{lstm_encoder_prepared.2} parent=0 // pred_check_branch
    %9 = sbr.rel (0) target = $region5
  $region4: #{lstm_encoder_prepared.2} parent=0 // pred_region
    _
  $region5: #{lstm_encoder_prepared.2} parent=0 // pred_fallthru
    _
  // Predicated region
  $region6: #{lstm_encoder_prepared.2} parent=0 // pred_check
    _
  $region7: #{lstm_encoder_prepared.2} parent=0 // pred_check_branch
    %11 = sbr.rel (0) target = $region9
  $region8: #{lstm_encoder_prepared.2} parent=0 // pred_region
    _
  $region9: #{lstm_encoder_prepared.2} parent=0 // pred_fallthru
    _
  // Predicated region
  $region10: #{lstm_encoder_prepared.2} parent=0 // pred_check
    _
  $region11: #{lstm_encoder_prepared.2} parent=0 // pred_check_branch
    %13 = sbr.rel (0) target = $region13
  $region12: #{lstm_encoder_prepared.2} parent=0 // pred_region
    _
  $region13: #{lstm_encoder_prepared.2} parent=0 // pred_fallthru
    _
  %v14 = vld [vmem:[%s0] sm:$0xff]
  %v15 = vld [vmem:[%s0 + $0x8] sm:$0xff]
  %v16 = vld [vmem:[%s1] sm:$0xff]
  %v17 = vld [vmem:[%s2] sm:$0x1]
  %v19 = vlaneseq
  %v20 = vshrl.u32 %v19, 7
  %v21 = vsub.s32 0, %v20
  %v22 = vrot.slane %v17, %v21
  %vm24 = vcmask 64512
  %v26 = vsel %vm24, %v14, 0
  %v29 = vsel %vm24, %v15, 0
  %31 = vmatprep.subr.mxu0 0.0
  %32 = vmatpush1.msra.mxu0 %v16
  %33 = vmatprep.subr.mxu0 0.0
  %34 = vmatpush1.msra.mxu0 0.0
  %35 = vmatprep.subr.mxu0 0.0
  %36 = vmatpush1.msra.mxu0 0.0
  %37 = vmatprep.subr.mxu0 0.0
  %38 = vmatpush1.msra.mxu0 0.0
  %39 = vmatprep.subr.mxu0 0.0
  %40 = vmatpush1.msra.mxu0 0.0
  %41 = vmatprep.subr.mxu0 0.0
  %42 = vmatpush1.msra.mxu0 0.0
  %43 = vmatprep.subr.mxu0 0.0
  %44 = vmatpush1.msra.mxu0 0.0
  %45 = vmatprep.subr.mxu0 0.0
  %46 = vmatpush1.msra.mxu0 0.0
  %47 = vmatprep.subr.mxu0 0.0
  %48 = vmatpush1.msra.mxu0 0.0
  %49 = vmatprep.subr.mxu0 0.0
  %50 = vmatpush1.msra.mxu0 0.0
  %51 = vmatprep.subr.mxu0 0.0
  %52 = vmatpush1.msra.mxu0 0.0
  %53 = vmatprep.subr.mxu0 0.0
  %54 = vmatpush1.msra.mxu0 0.0
  %55 = vmatprep.subr.mxu0 0.0
  %56 = vmatpush1.msra.mxu0 0.0
  %57 = vmatprep.subr.mxu0 0.0
  %58 = vmatpush1.msra.mxu0 0.0
  %59 = vmatprep.subr.mxu0 0.0
  %60 = vmatpush1.msra.mxu0 0.0
  %61 = vmatprep.subr.mxu0 0.0
  %62 = vmatpush1.msra.mxu0 0.0
  %63 = vmatprep.subr.mxu0 0.0
  %64 = vmatpush1.msra.mxu0 0.0
  %65 = vmatprep.subr.mxu0 0.0
  %66 = vmatpush1.msra.mxu0 0.0
  %67 = vmatprep.subr.mxu0 0.0
  %68 = vmatpush1.msra.mxu0 0.0
  %69 = vmatprep.subr.mxu0 0.0
  %70 = vmatpush1.msra.mxu0 0.0
  %71 = vmatprep.subr.mxu0 0.0
  %72 = vmatpush1.msra.mxu0 0.0
  %73 = vmatprep.subr.mxu0 0.0
  %74 = vmatpush1.msra.mxu0 0.0
  %75 = vmatprep.subr.mxu0 0.0
  %76 = vmatpush1.msra.mxu0 0.0
  %77 = vmatprep.subr.mxu0 0.0
  %78 = vmatpush1.msra.mxu0 0.0
  %79 = vmatprep.subr.mxu0 0.0
  %80 = vmatpush1.msra.mxu0 0.0
  %81 = vmatprep.subr.mxu0 0.0
  %82 = vmatpush1.msra.mxu0 0.0
  %83 = vmatprep.subr.mxu0 0.0
  %84 = vmatpush1.msra.mxu0 0.0
  %85 = vmatprep.subr.mxu0 0.0
  %86 = vmatpush1.msra.mxu0 0.0
  %87 = vmatprep.subr.mxu0 0.0
  %88 = vmatpush1.msra.mxu0 0.0
  %89 = vmatprep.subr.mxu0 0.0
  %90 = vmatpush1.msra.mxu0 0.0
  %91 = vmatprep.subr.mxu0 0.0
  %92 = vmatpush1.msra.mxu0 0.0
  %93 = vmatprep.subr.mxu0 0.0
  %94 = vmatpush1.msra.mxu0 0.0
  %95 = vmatprep.mubr.f32.mxu0 0.0
  %96 = vmatmul.mubr.f32.gmra.mrb[0].mxu0 %v26
  %v97 = vpop.f32.mrb[0].mxu0
  %v98 = vadd.f32 %v22, %v97
  %v99 = vpop.f32.mrb[0].mxu0
  %100 = vmatprep.mubr.f32.mxu0 0.0
  %101 = vmatmul.mubr.f32.gmra.mrb[0].mxu0 %v29
  %v102 = vpop.f32.mrb[0].mxu0
  %v103 = vadd.f32 %v22, %v102
  %v104 = vpop.f32.mrb[0].mxu0
  %105 = vdwg.mxu0
  %106 = vst [vmem:[%s3] sm:$0xff] %v98
  %107 = vst [vmem:[%s3 + $0x8] sm:$0xff] %v103
  // Predicated region
  $region14: #{lstm_encoder_prepared.2} parent=0 // pred_check
    _
  $region15: #{lstm_encoder_prepared.2} parent=0 // pred_check_branch
    %109 = sbr.rel (0) target = $region17
  $region16: #{lstm_encoder_prepared.2} parent=0 // pred_region
    _
  $region17: #{lstm_encoder_prepared.2} parent=0 // pred_fallthru
    _
  // Predicated region
  $region18: #{lstm_encoder_prepared.2} parent=0 // pred_check
    _
  $region19: #{lstm_encoder_prepared.2} parent=0 // pred_check_branch
    %111 = sbr.rel (0) target = $region21
  $region20: #{lstm_encoder_prepared.2} parent=0 // pred_region
    _
  $region21: #{lstm_encoder_prepared.2} parent=0 // pred_fallthru
    _

// kernel: lstm_encoder_prepared.3
$region0: #{lstm_encoder_prepared.3}
  #allocation0 [shape = 'u32[]', space=smem, size = 0x4, offset = 0x4, fixed_abs, tag = 'smem constant byte address 0x4 - core index']
  #allocation1 [shape = 'u32[144,128]{1,0:T(1,128)}', space=vmem, size = 0x12000, scoped, tag = 'internal scratch']
  #allocation2 [shape = 'f32[2,32]{1,0:T(2,128)}', space=vmem, size = 0x400, scoped, tag = 'scratch operand']
  #allocation3 [shape = 'f32[2,32]{1,0:T(2,128)}', space=vmem, size = 0x400, scoped, tag = 'scratch operand']
  %s0 = inlined_call_operand.vmem [shape: f32[8,2,128], index: 0, kind: input, shape index: {}]
  %s1 = inlined_call_operand.vmem [shape: f32[32,128], index: 1, kind: input, shape index: {}]
  %s2 = inlined_call_operand.hbm [shape: f32[2,32], index: 2, kind: output, shape index: {0}]
  %s3 = inlined_call_operand.hbm [shape: f32[2,32], index: 3, kind: output, shape index: {1}]
  %4 = xla_tuple %s2, %s3
  %s5 = sld [smem:[#allocation0]]
  $region34: #{lstm_encoder_prepared.3} parent=0
    _
  %s7 = ssub.s32 1, %s5
  %s8 = scalar_select 0, %s7, %s5
  $region1: #{lstm_encoder_prepared.3} parent=0
    #allocation4 [shape = 'u8[1024]{0}', space=vmem, size = 0x400, scoped, tag = 'output window, operand 0, single buffered']
    #allocation5 [shape = 's32[1]{0}', space=sflag, size = 0x4, scoped, tag = 'scoped memory for lstm_encoder_prepared.3']
    #allocation6 [shape = 'u8[1024]{0}', space=vmem, size = 0x400, scoped, tag = 'output window, operand 1, single buffered']
    #allocation7 [shape = 's32[1]{0}', space=sflag, size = 0x4, scoped, tag = 'scoped memory for lstm_encoder_prepared.3']
    %9 = vsyncpa [#allocation5], 0
    %10 = vsyncpa [#allocation7], 0
    // Predicated region
    $region2: #{lstm_encoder_prepared.3} parent=1 // pred_check
      _
    $region3: #{lstm_encoder_prepared.3} parent=1 // pred_check_branch
      %12 = sbr.rel (0) target = $region5
    $region4: #{lstm_encoder_prepared.3} parent=1 // pred_region
      _
    $region5: #{lstm_encoder_prepared.3} parent=1 // pred_fallthru
      _
    // Predicated region
    $region6: #{lstm_encoder_prepared.3} parent=1 // pred_check
      _
    $region7: #{lstm_encoder_prepared.3} parent=1 // pred_check_branch
      %14 = sbr.rel (0) target = $region9
    $region8: #{lstm_encoder_prepared.3} parent=1 // pred_region
      _
    $region9: #{lstm_encoder_prepared.3} parent=1 // pred_fallthru
      _
    %p15 = scmp.eq.s32.totalorder 0, 0
    // Predicated region
    $region10: #{lstm_encoder_prepared.3} parent=1 // pred_check
      %p16 = pneg %p15
    $region11: #{lstm_encoder_prepared.3} parent=1 // pred_check_branch
      %18 = sbr.rel (%p16) target = $region13
    $region12: #{lstm_encoder_prepared.3} parent=1 // pred_region
      %vm19 = vcmask 254976
      %20 = vst.msk [vmem:[#allocation2] sm:$0x3] %vm19, 0.0
      %21 = vst.msk [vmem:[#allocation3] sm:$0x3] %vm19, 0.0
    $region13: #{lstm_encoder_prepared.3} parent=1 // pred_fallthru
      _
    %v22 = vld [vmem:[%s1] sm:$0xff]
    %v23 = vld [vmem:[%s1 + $0x8] sm:$0xff]
    %v24 = vld [vmem:[%s1 + $0x10] sm:$0xff]
    %v25 = vld [vmem:[%s1 + $0x18] sm:$0xff]
    %v26 = vld [vmem:[#allocation2] sm:$0x3]
    %v27 = vld [vmem:[#allocation3] sm:$0x3]
    %v28 = vld [vmem:[%s0] sm:$0x3]
    %vm29 = vcmask 261120
    %v31 = vsel %vm29, %v26, 0
    %33 = vmatprep.subr.mxu0 0.0
    %34 = vmatpush1.msra.mxu0 %v22
    %35 = vmatprep.subr.mxu0 0.0
    %36 = vmatpush1.msra.mxu0 %v23
    %37 = vmatprep.subr.mxu0 0.0
    %38 = vmatpush1.msra.mxu0 %v24
    %39 = vmatprep.subr.mxu0 0.0
    %40 = vmatpush1.msra.mxu0 %v25
    %41 = vmatprep.subr.mxu0 0.0
    %42 = vmatpush1.msra.mxu0 0.0
    %43 = vmatprep.subr.mxu0 0.0
    %44 = vmatpush1.msra.mxu0 0.0
    %45 = vmatprep.subr.mxu0 0.0
    %46 = vmatpush1.msra.mxu0 0.0
    %47 = vmatprep.subr.mxu0 0.0
    %48 = vmatpush1.msra.mxu0 0.0
    %49 = vmatprep.subr.mxu0 0.0
    %50 = vmatpush1.msra.mxu0 0.0
    %51 = vmatprep.subr.mxu0 0.0
    %52 = vmatpush1.msra.mxu0 0.0
    %53 = vmatprep.subr.mxu0 0.0
    %54 = vmatpush1.msra.mxu0 0.0
    %55 = vmatprep.subr.mxu0 0.0
    %56 = vmatpush1.msra.mxu0 0.0
    %57 = vmatprep.subr.mxu0 0.0
    %58 = vmatpush1.msra.mxu0 0.0
    %59 = vmatprep.subr.mxu0 0.0
    %60 = vmatpush1.msra.mxu0 0.0
    %61 = vmatprep.subr.mxu0 0.0
    %62 = vmatpush1.msra.mxu0 0.0
    %63 = vmatprep.subr.mxu0 0.0
    %64 = vmatpush1.msra.mxu0 0.0
    %65 = vmatprep.subr.mxu0 0.0
    %66 = vmatpush1.msra.mxu0 0.0
    %67 = vmatprep.subr.mxu0 0.0
    %68 = vmatpush1.msra.mxu0 0.0
    %69 = vmatprep.subr.mxu0 0.0
    %70 = vmatpush1.msra.mxu0 0.0
    %71 = vmatprep.subr.mxu0 0.0
    %72 = vmatpush1.msra.mxu0 0.0
    %73 = vmatprep.subr.mxu0 0.0
    %74 = vmatpush1.msra.mxu0 0.0
    %75 = vmatprep.subr.mxu0 0.0
    %76 = vmatpush1.msra.mxu0 0.0
    %77 = vmatprep.subr.mxu0 0.0
    %78 = vmatpush1.msra.mxu0 0.0
    %79 = vmatprep.subr.mxu0 0.0
    %80 = vmatpush1.msra.mxu0 0.0
    %81 = vmatprep.subr.mxu0 0.0
    %82 = vmatpush1.msra.mxu0 0.0
    %83 = vmatprep.subr.mxu0 0.0
    %84 = vmatpush1.msra.mxu0 0.0
    %85 = vmatprep.subr.mxu0 0.0
    %86 = vmatpush1.msra.mxu0 0.0
    %87 = vmatprep.subr.mxu0 0.0
    %88 = vmatpush1.msra.mxu0 0.0
    %89 = vmatprep.subr.mxu0 0.0
    %90 = vmatpush1.msra.mxu0 0.0
    %91 = vmatprep.subr.mxu0 0.0
    %92 = vmatpush1.msra.mxu0 0.0
    %93 = vmatprep.subr.mxu0 0.0
    %94 = vmatpush1.msra.mxu0 0.0
    %95 = vmatprep.subr.mxu0 0.0
    %96 = vmatpush1.msra.mxu0 0.0
    %97 = vmatprep.mubr.f32.mxu0 0.0
    %98 = vmatmul.mubr.f32.gmra.mrb[0].mxu0 %v31
    %v99 = vpop.f32.mrb[0].mxu0
    %v100 = vadd.f32 0.0, %v99
    %v101 = vpop.f32.mrb[0].mxu0
    %102 = vdwg.mxu0
    %v103 = vadd.f32 %v28, %v100
    %v104 = vtanh.pop %v103
    %v105 = vmul.f32 %v104, 0.5
    %v106 = vadd.f32 %v105, 0.5
    %108 = vrot.lane.b32.xlu0 %v27, 32
    %v109 = vpop.permute.xlu0 %108
    %v111 = vmul.f32 %v106, %v109
    %113 = vrot.lane.b32.xlu0 %v104, 32
    %v114 = vpop.permute.xlu0 %113
    %v116 = vmul.f32 %v106, %v114
    %118 = vrot.lane.b32.xlu0 %v116, 32
    %v119 = vpop.permute.xlu0 %118
    %v121 = vadd.f32 %v111, %v119
    %v122 = vtanh.pop %v121
    %124 = vrot.lane.b32.xlu0 %v122, 32
    %v125 = vpop.permute.xlu0 %124
    %v127 = vmul.f32 %v106, %v125
    %s128 = scalar_lea.vmem %s0, 2
    %v129 = vld [vmem:[%s128] sm:$0x3]
    %131 = vrot.lane.b32.xlu0 %v127, 64
    %v132 = vpop.permute.xlu0 %131
    %v133 = vsel %vm29, %v132, 0
    %135 = vmatprep.subr.mxu0 0.0
    %136 = vmatpush1.msra.mxu0 %v22
    %137 = vmatprep.subr.mxu0 0.0
    %138 = vmatpush1.msra.mxu0 %v23
    %139 = vmatprep.subr.mxu0 0.0
    %140 = vmatpush1.msra.mxu0 %v24
    %141 = vmatprep.subr.mxu0 0.0
    %142 = vmatpush1.msra.mxu0 %v25
    %143 = vmatprep.subr.mxu0 0.0
    %144 = vmatpush1.msra.mxu0 0.0
    %145 = vmatprep.subr.mxu0 0.0
    %146 = vmatpush1.msra.mxu0 0.0
    %147 = vmatprep.subr.mxu0 0.0
    %148 = vmatpush1.msra.mxu0 0.0
    %149 = vmatprep.subr.mxu0 0.0
    %150 = vmatpush1.msra.mxu0 0.0
    %151 = vmatprep.subr.mxu0 0.0
    %152 = vmatpush1.msra.mxu0 0.0
    %153 = vmatprep.subr.mxu0 0.0
    %154 = vmatpush1.msra.mxu0 0.0
    %155 = vmatprep.subr.mxu0 0.0
    %156 = vmatpush1.msra.mxu0 0.0
    %157 = vmatprep.subr.mxu0 0.0
    %158 = vmatpush1.msra.mxu0 0.0
    %159 = vmatprep.subr.mxu0 0.0
    %160 = vmatpush1.msra.mxu0 0.0
    %161 = vmatprep.subr.mxu0 0.0
    %162 = vmatpush1.msra.mxu0 0.0
    %163 = vmatprep.subr.mxu0 0.0
    %164 = vmatpush1.msra.mxu0 0.0
    %165 = vmatprep.subr.mxu0 0.0
    %166 = vmatpush1.msra.mxu0 0.0
    %167 = vmatprep.subr.mxu0 0.0
    %168 = vmatpush1.msra.mxu0 0.0
    %169 = vmatprep.subr.mxu0 0.0
    %170 = vmatpush1.msra.mxu0 0.0
    %171 = vmatprep.subr.mxu0 0.0
    %172 = vmatpush1.msra.mxu0 0.0
    %173 = vmatprep.subr.mxu0 0.0
    %174 = vmatpush1.msra.mxu0 0.0
    %175 = vmatprep.subr.mxu0 0.0
    %176 = vmatpush1.msra.mxu0 0.0
    %177 = vmatprep.subr.mxu0 0.0
    %178 = vmatpush1.msra.mxu0 0.0
    %179 = vmatprep.subr.mxu0 0.0
    %180 = vmatpush1.msra.mxu0 0.0
    %181 = vmatprep.subr.mxu0 0.0
    %182 = vmatpush1.msra.mxu0 0.0
    %183 = vmatprep.subr.mxu0 0.0
    %184 = vmatpush1.msra.mxu0 0.0
    %185 = vmatprep.subr.mxu0 0.0
    %186 = vmatpush1.msra.mxu0 0.0
    %187 = vmatprep.subr.mxu0 0.0
    %188 = vmatpush1.msra.mxu0 0.0
    %189 = vmatprep.subr.mxu0 0.0
    %190 = vmatpush1.msra.mxu0 0.0
    %191 = vmatprep.subr.mxu0 0.0
    %192 = vmatpush1.msra.mxu0 0.0
    %193 = vmatprep.subr.mxu0 0.0
    %194 = vmatpush1.msra.mxu0 0.0
    %195 = vmatprep.subr.mxu0 0.0
    %196 = vmatpush1.msra.mxu0 0.0
    %197 = vmatprep.subr.mxu0 0.0
    %198 = vmatpush1.msra.mxu0 0.0
    %199 = vmatprep.mubr.f32.mxu0 0.0
    %200 = vmatmul.mubr.f32.gmra.mrb[0].mxu0 %v133
    %v201 = vpop.f32.mrb[0].mxu0
    %v202 = vadd.f32 0.0, %v201
    %v203 = vpop.f32.mrb[0].mxu0
    %204 = vdwg.mxu0
    %v205 = vadd.f32 %v129, %v202
    %v206 = vtanh.pop %v205
    %v207 = vmul.f32 %v206, 0.5
    %v208 = vadd.f32 %v207, 0.5
    %v209 = vmul.f32 %v208, %v121
    %211 = vrot.lane.b32.xlu0 %v206, 32
    %v212 = vpop.permute.xlu0 %211
    %v214 = vmul.f32 %v208, %v212
    %216 = vrot.lane.b32.xlu0 %v214, 32
    %v217 = vpop.permute.xlu0 %216
    %v219 = vadd.f32 %v209, %v217
    %v220 = vtanh.pop %v219
    %222 = vrot.lane.b32.xlu0 %v220, 32
    %v223 = vpop.permute.xlu0 %222
    %v225 = vmul.f32 %v208, %v223
    %s226 = scalar_lea.vmem %s0, 4
    %v227 = vld [vmem:[%s226] sm:$0x3]
    %229 = vrot.lane.b32.xlu0 %v225, 64
    %v230 = vpop.permute.xlu0 %229
    %v231 = vsel %vm29, %v230, 0
    %233 = vmatprep.subr.mxu0 0.0
    %234 = vmatpush1.msra.mxu0 %v22
    %235 = vmatprep.subr.mxu0 0.0
    %236 = vmatpush1.msra.mxu0 %v23
    %237 = vmatprep.subr.mxu0 0.0
    %238 = vmatpush1.msra.mxu0 %v24
    %239 = vmatprep.subr.mxu0 0.0
    %240 = vmatpush1.msra.mxu0 %v25
    %241 = vmatprep.subr.mxu0 0.0
    %242 = vmatpush1.msra.mxu0 0.0
    %243 = vmatprep.subr.mxu0 0.0
    %244 = vmatpush1.msra.mxu0 0.0
    %245 = vmatprep.subr.mxu0 0.0
    %246 = vmatpush1.msra.mxu0 0.0
    %247 = vmatprep.subr.mxu0 0.0
    %248 = vmatpush1.msra.mxu0 0.0
    %249 = vmatprep.subr.mxu0 0.0
    %250 = vmatpush1.msra.mxu0 0.0
    %251 = vmatprep.subr.mxu0 0.0
    %252 = vmatpush1.msra.mxu0 0.0
    %253 = vmatprep.subr.mxu0 0.0
    %254 = vmatpush1.msra.mxu0 0.0
    %255 = vmatprep.subr.mxu0 0.0
    %256 = vmatpush1.msra.mxu0 0.0
    %257 = vmatprep.subr.mxu0 0.0
    %258 = vmatpush1.msra.mxu0 0.0
    %259 = vmatprep.subr.mxu0 0.0
    %260 = vmatpush1.msra.mxu0 0.0
    %261 = vmatprep.subr.mxu0 0.0
    %262 = vmatpush1.msra.mxu0 0.0
    %263 = vmatprep.subr.mxu0 0.0
    %264 = vmatpush1.msra.mxu0 0.0
    %265 = vmatprep.subr.mxu0 0.0
    %266 = vmatpush1.msra.mxu0 0.0
    %267 = vmatprep.subr.mxu0 0.0
    %268 = vmatpush1.msra.mxu0 0.0
    %269 = vmatprep.subr.mxu0 0.0
    %270 = vmatpush1.msra.mxu0 0.0
    %271 = vmatprep.subr.mxu0 0.0
    %272 = vmatpush1.msra.mxu0 0.0
    %273 = vmatprep.subr.mxu0 0.0
    %274 = vmatpush1.msra.mxu0 0.0
    %275 = vmatprep.subr.mxu0 0.0
    %276 = vmatpush1.msra.mxu0 0.0
    %277 = vmatprep.subr.mxu0 0.0
    %278 = vmatpush1.msra.mxu0 0.0
    %279 = vmatprep.subr.mxu0 0.0
    %280 = vmatpush1.msra.mxu0 0.0
    %281 = vmatprep.subr.mxu0 0.0
    %282 = vmatpush1.msra.mxu0 0.0
    %283 = vmatprep.subr.mxu0 0.0
    %284 = vmatpush1.msra.mxu0 0.0
    %285 = vmatprep.subr.mxu0 0.0
    %286 = vmatpush1.msra.mxu0 0.0
    %287 = vmatprep.subr.mxu0 0.0
    %288 = vmatpush1.msra.mxu0 0.0
    %289 = vmatprep.subr.mxu0 0.0
    %290 = vmatpush1.msra.mxu0 0.0
    %291 = vmatprep.subr.mxu0 0.0
    %292 = vmatpush1.msra.mxu0 0.0
    %293 = vmatprep.subr.mxu0 0.0
    %294 = vmatpush1.msra.mxu0 0.0
    %295 = vmatprep.subr.mxu0 0.0
    %296 = vmatpush1.msra.mxu0 0.0
    %297 = vmatprep.mubr.f32.mxu0 0.0
    %298 = vmatmul.mubr.f32.gmra.mrb[0].mxu0 %v231
    %v299 = vpop.f32.mrb[0].mxu0
    %v300 = vadd.f32 0.0, %v299
    %v301 = vpop.f32.mrb[0].mxu0
    %302 = vdwg.mxu0
    %v303 = vadd.f32 %v227, %v300
    %v304 = vtanh.pop %v303
    %v305 = vmul.f32 %v304, 0.5
    %v306 = vadd.f32 %v305, 0.5
    %v307 = vmul.f32 %v306, %v219
    %309 = vrot.lane.b32.xlu0 %v304, 32
    %v310 = vpop.permute.xlu0 %309
    %v312 = vmul.f32 %v306, %v310
    %314 = vrot.lane.b32.xlu0 %v312, 32
    %v315 = vpop.permute.xlu0 %314
    %v317 = vadd.f32 %v307, %v315
    %v318 = vtanh.pop %v317
    %320 = vrot.lane.b32.xlu0 %v318, 32
    %v321 = vpop.permute.xlu0 %320
    %v323 = vmul.f32 %v306, %v321
    %s324 = scalar_lea.vmem %s0, 6
    %v325 = vld [vmem:[%s324] sm:$0x3]
    %327 = vrot.lane.b32.xlu0 %v323, 64
    %v328 = vpop.permute.xlu0 %327
    %v329 = vsel %vm29, %v328, 0
    %331 = vmatprep.subr.mxu0 0.0
    %332 = vmatpush1.msra.mxu0 %v22
    %333 = vmatprep.subr.mxu0 0.0
    %334 = vmatpush1.msra.mxu0 %v23
    %335 = vmatprep.subr.mxu0 0.0
    %336 = vmatpush1.msra.mxu0 %v24
    %337 = vmatprep.subr.mxu0 0.0
    %338 = vmatpush1.msra.mxu0 %v25
    %339 = vmatprep.subr.mxu0 0.0
    %340 = vmatpush1.msra.mxu0 0.0
    %341 = vmatprep.subr.mxu0 0.0
    %342 = vmatpush1.msra.mxu0 0.0
    %343 = vmatprep.subr.mxu0 0.0
    %344 = vmatpush1.msra.mxu0 0.0
    %345 = vmatprep.subr.mxu0 0.0
    %346 = vmatpush1.msra.mxu0 0.0
    %347 = vmatprep.subr.mxu0 0.0
    %348 = vmatpush1.msra.mxu0 0.0
    %349 = vmatprep.subr.mxu0 0.0
    %350 = vmatpush1.msra.mxu0 0.0
    %351 = vmatprep.subr.mxu0 0.0
    %352 = vmatpush1.msra.mxu0 0.0
    %353 = vmatprep.subr.mxu0 0.0
    %354 = vmatpush1.msra.mxu0 0.0
    %355 = vmatprep.subr.mxu0 0.0
    %356 = vmatpush1.msra.mxu0 0.0
    %357 = vmatprep.subr.mxu0 0.0
    %358 = vmatpush1.msra.mxu0 0.0
    %359 = vmatprep.subr.mxu0 0.0
    %360 = vmatpush1.msra.mxu0 0.0
    %361 = vmatprep.subr.mxu0 0.0
    %362 = vmatpush1.msra.mxu0 0.0
    %363 = vmatprep.subr.mxu0 0.0
    %364 = vmatpush1.msra.mxu0 0.0
    %365 = vmatprep.subr.mxu0 0.0
    %366 = vmatpush1.msra.mxu0 0.0
    %367 = vmatprep.subr.mxu0 0.0
    %368 = vmatpush1.msra.mxu0 0.0
    %369 = vmatprep.subr.mxu0 0.0
    %370 = vmatpush1.msra.mxu0 0.0
    %371 = vmatprep.subr.mxu0 0.0
    %372 = vmatpush1.msra.mxu0 0.0
    %373 = vmatprep.subr.mxu0 0.0
    %374 = vmatpush1.msra.mxu0 0.0
    %375 = vmatprep.subr.mxu0 0.0
    %376 = vmatpush1.msra.mxu0 0.0
    %377 = vmatprep.subr.mxu0 0.0
    %378 = vmatpush1.msra.mxu0 0.0
    %379 = vmatprep.subr.mxu0 0.0
    %380 = vmatpush1.msra.mxu0 0.0
    %381 = vmatprep.subr.mxu0 0.0
    %382 = vmatpush1.msra.mxu0 0.0
    %383 = vmatprep.subr.mxu0 0.0
    %384 = vmatpush1.msra.mxu0 0.0
    %385 = vmatprep.subr.mxu0 0.0
    %386 = vmatpush1.msra.mxu0 0.0
    %387 = vmatprep.subr.mxu0 0.0
    %388 = vmatpush1.msra.mxu0 0.0
    %389 = vmatprep.subr.mxu0 0.0
    %390 = vmatpush1.msra.mxu0 0.0
    %391 = vmatprep.subr.mxu0 0.0
    %392 = vmatpush1.msra.mxu0 0.0
    %393 = vmatprep.subr.mxu0 0.0
    %394 = vmatpush1.msra.mxu0 0.0
    %395 = vmatprep.mubr.f32.mxu0 0.0
    %396 = vmatmul.mubr.f32.gmra.mrb[0].mxu0 %v329
    %v397 = vpop.f32.mrb[0].mxu0
    %v398 = vadd.f32 0.0, %v397
    %v399 = vpop.f32.mrb[0].mxu0
    %400 = vdwg.mxu0
    %v401 = vadd.f32 %v325, %v398
    %v402 = vtanh.pop %v401
    %v403 = vmul.f32 %v402, 0.5
    %v404 = vadd.f32 %v403, 0.5
    %v405 = vmul.f32 %v404, %v317
    %407 = vrot.lane.b32.xlu0 %v402, 32
    %v408 = vpop.permute.xlu0 %407
    %v410 = vmul.f32 %v404, %v408
    %412 = vrot.lane.b32.xlu0 %v410, 32
    %v413 = vpop.permute.xlu0 %412
    %v415 = vadd.f32 %v405, %v413
    %v416 = vtanh.pop %v415
    %418 = vrot.lane.b32.xlu0 %v416, 32
    %v419 = vpop.permute.xlu0 %418
    %v421 = vmul.f32 %v404, %v419
    %s422 = scalar_lea.vmem %s0, 8
    %v423 = vld [vmem:[%s422] sm:$0x3]
    %425 = vrot.lane.b32.xlu0 %v421, 64
    %v426 = vpop.permute.xlu0 %425
    %v427 = vsel %vm29, %v426, 0
    %429 = vmatprep.subr.mxu0 0.0
    %430 = vmatpush1.msra.mxu0 %v22
    %431 = vmatprep.subr.mxu0 0.0
    %432 = vmatpush1.msra.mxu0 %v23
    %433 = vmatprep.subr.mxu0 0.0
    %434 = vmatpush1.msra.mxu0 %v24
    %435 = vmatprep.subr.mxu0 0.0
    %436 = vmatpush1.msra.mxu0 %v25
    %437 = vmatprep.subr.mxu0 0.0
    %438 = vmatpush1.msra.mxu0 0.0
    %439 = vmatprep.subr.mxu0 0.0
    %440 = vmatpush1.msra.mxu0 0.0
    %441 = vmatprep.subr.mxu0 0.0
    %442 = vmatpush1.msra.mxu0 0.0
    %443 = vmatprep.subr.mxu0 0.0
    %444 = vmatpush1.msra.mxu0 0.0
    %445 = vmatprep.subr.mxu0 0.0
    %446 = vmatpush1.msra.mxu0 0.0
    %447 = vmatprep.subr.mxu0 0.0
    %448 = vmatpush1.msra.mxu0 0.0
    %449 = vmatprep.subr.mxu0 0.0
    %450 = vmatpush1.msra.mxu0 0.0
    %451 = vmatprep.subr.mxu0 0.0
    %452 = vmatpush1.msra.mxu0 0.0
    %453 = vmatprep.subr.mxu0 0.0
    %454 = vmatpush1.msra.mxu0 0.0
    %455 = vmatprep.subr.mxu0 0.0
    %456 = vmatpush1.msra.mxu0 0.0
    %457 = vmatprep.subr.mxu0 0.0
    %458 = vmatpush1.msra.mxu0 0.0
    %459 = vmatprep.subr.mxu0 0.0
    %460 = vmatpush1.msra.mxu0 0.0
    %461 = vmatprep.subr.mxu0 0.0
    %462 = vmatpush1.msra.mxu0 0.0
    %463 = vmatprep.subr.mxu0 0.0
    %464 = vmatpush1.msra.mxu0 0.0
    %465 = vmatprep.subr.mxu0 0.0
    %466 = vmatpush1.msra.mxu0 0.0
    %467 = vmatprep.subr.mxu0 0.0
    %468 = vmatpush1.msra.mxu0 0.0
    %469 = vmatprep.subr.mxu0 0.0
    %470 = vmatpush1.msra.mxu0 0.0
    %471 = vmatprep.subr.mxu0 0.0
    %472 = vmatpush1.msra.mxu0 0.0
    %473 = vmatprep.subr.mxu0 0.0
    %474 = vmatpush1.msra.mxu0 0.0
    %475 = vmatprep.subr.mxu0 0.0
    %476 = vmatpush1.msra.mxu0 0.0
    %477 = vmatprep.subr.mxu0 0.0
    %478 = vmatpush1.msra.mxu0 0.0
    %479 = vmatprep.subr.mxu0 0.0
    %480 = vmatpush1.msra.mxu0 0.0
    %481 = vmatprep.subr.mxu0 0.0
    %482 = vmatpush1.msra.mxu0 0.0
    %483 = vmatprep.subr.mxu0 0.0
    %484 = vmatpush1.msra.mxu0 0.0
    %485 = vmatprep.subr.mxu0 0.0
    %486 = vmatpush1.msra.mxu0 0.0
    %487 = vmatprep.subr.mxu0 0.0
    %488 = vmatpush1.msra.mxu0 0.0
    %489 = vmatprep.subr.mxu0 0.0
    %490 = vmatpush1.msra.mxu0 0.0
    %491 = vmatprep.subr.mxu0 0.0
    %492 = vmatpush1.msra.mxu0 0.0
    %493 = vmatprep.mubr.f32.mxu0 0.0
    %494 = vmatmul.mubr.f32.gmra.mrb[0].mxu0 %v427
    %v495 = vpop.f32.mrb[0].mxu0
    %v496 = vadd.f32 0.0, %v495
    %v497 = vpop.f32.mrb[0].mxu0
    %498 = vdwg.mxu0
    %v499 = vadd.f32 %v423, %v496
    %v500 = vtanh.pop %v499
    %v501 = vmul.f32 %v500, 0.5
    %v502 = vadd.f32 %v501, 0.5
    %v503 = vmul.f32 %v502, %v415
    %505 = vrot.lane.b32.xlu0 %v500, 32
    %v506 = vpop.permute.xlu0 %505
    %v508 = vmul.f32 %v502, %v506
    %510 = vrot.lane.b32.xlu0 %v508, 32
    %v511 = vpop.permute.xlu0 %510
    %v513 = vadd.f32 %v503, %v511
    %v514 = vtanh.pop %v513
    %516 = vrot.lane.b32.xlu0 %v514, 32
    %v517 = vpop.permute.xlu0 %516
    %v519 = vmul.f32 %v502, %v517
    %s520 = scalar_lea.vmem %s0, 10
    %v521 = vld [vmem:[%s520] sm:$0x3]
    %523 = vrot.lane.b32.xlu0 %v519, 64
    %v524 = vpop.permute.xlu0 %523
    %v525 = vsel %vm29, %v524, 0
    %527 = vmatprep.subr.mxu0 0.0
    %528 = vmatpush1.msra.mxu0 %v22
    %529 = vmatprep.subr.mxu0 0.0
    %530 = vmatpush1.msra.mxu0 %v23
    %531 = vmatprep.subr.mxu0 0.0
    %532 = vmatpush1.msra.mxu0 %v24
    %533 = vmatprep.subr.mxu0 0.0
    %534 = vmatpush1.msra.mxu0 %v25
    %535 = vmatprep.subr.mxu0 0.0
    %536 = vmatpush1.msra.mxu0 0.0
    %537 = vmatprep.subr.mxu0 0.0
    %538 = vmatpush1.msra.mxu0 0.0
    %539 = vmatprep.subr.mxu0 0.0
    %540 = vmatpush1.msra.mxu0 0.0
    %541 = vmatprep.subr.mxu0 0.0
    %542 = vmatpush1.msra.mxu0 0.0
    %543 = vmatprep.subr.mxu0 0.0
    %544 = vmatpush1.msra.mxu0 0.0
    %545 = vmatprep.subr.mxu0 0.0
    %546 = vmatpush1.msra.mxu0 0.0
    %547 = vmatprep.subr.mxu0 0.0
    %548 = vmatpush1.msra.mxu0 0.0
    %549 = vmatprep.subr.mxu0 0.0
    %550 = vmatpush1.msra.mxu0 0.0
    %551 = vmatprep.subr.mxu0 0.0
    %552 = vmatpush1.msra.mxu0 0.0
    %553 = vmatprep.subr.mxu0 0.0
    %554 = vmatpush1.msra.mxu0 0.0
    %555 = vmatprep.subr.mxu0 0.0
    %556 = vmatpush1.msra.mxu0 0.0
    %557 = vmatprep.subr.mxu0 0.0
    %558 = vmatpush1.msra.mxu0 0.0
    %559 = vmatprep.subr.mxu0 0.0
    %560 = vmatpush1.msra.mxu0 0.0
    %561 = vmatprep.subr.mxu0 0.0
    %562 = vmatpush1.msra.mxu0 0.0
    %563 = vmatprep.subr.mxu0 0.0
    %564 = vmatpush1.msra.mxu0 0.0
    %565 = vmatprep.subr.mxu0 0.0
    %566 = vmatpush1.msra.mxu0 0.0
    %567 = vmatprep.subr.mxu0 0.0
    %568 = vmatpush1.msra.mxu0 0.0
    %569 = vmatprep.subr.mxu0 0.0
    %570 = vmatpush1.msra.mxu0 0.0
    %571 = vmatprep.subr.mxu0 0.0
    %572 = vmatpush1.msra.mxu0 0.0
    %573 = vmatprep.subr.mxu0 0.0
    %574 = vmatpush1.msra.mxu0 0.0
    %575 = vmatprep.subr.mxu0 0.0
    %576 = vmatpush1.msra.mxu0 0.0
    %577 = vmatprep.subr.mxu0 0.0
    %578 = vmatpush1.msra.mxu0 0.0
    %579 = vmatprep.subr.mxu0 0.0
    %580 = vmatpush1.msra.mxu0 0.0
    %581 = vmatprep.subr.mxu0 0.0
    %582 = vmatpush1.msra.mxu0 0.0
    %583 = vmatprep.subr.mxu0 0.0
    %584 = vmatpush1.msra.mxu0 0.0
    %585 = vmatprep.subr.mxu0 0.0
    %586 = vmatpush1.msra.mxu0 0.0
    %587 = vmatprep.subr.mxu0 0.0
    %588 = vmatpush1.msra.mxu0 0.0
    %589 = vmatprep.subr.mxu0 0.0
    %590 = vmatpush1.msra.mxu0 0.0
    %591 = vmatprep.mubr.f32.mxu0 0.0
    %592 = vmatmul.mubr.f32.gmra.mrb[0].mxu0 %v525
    %v593 = vpop.f32.mrb[0].mxu0
    %v594 = vadd.f32 0.0, %v593
    %v595 = vpop.f32.mrb[0].mxu0
    %596 = vdwg.mxu0
    %v597 = vadd.f32 %v521, %v594
    %v598 = vtanh.pop %v597
    %v599 = vmul.f32 %v598, 0.5
    %v600 = vadd.f32 %v599, 0.5
    %v601 = vmul.f32 %v600, %v513
    %603 = vrot.lane.b32.xlu0 %v598, 32
    %v604 = vpop.permute.xlu0 %603
    %v606 = vmul.f32 %v600, %v604
    %608 = vrot.lane.b32.xlu0 %v606, 32
    %v609 = vpop.permute.xlu0 %608
    %v611 = vadd.f32 %v601, %v609
    %v612 = vtanh.pop %v611
    %614 = vrot.lane.b32.xlu0 %v612, 32
    %v615 = vpop.permute.xlu0 %614
    %v617 = vmul.f32 %v600, %v615
    %s618 = scalar_lea.vmem %s0, 12
    %v619 = vld [vmem:[%s618] sm:$0x3]
    %621 = vrot.lane.b32.xlu0 %v617, 64
    %v622 = vpop.permute.xlu0 %621
    %v623 = vsel %vm29, %v622, 0
    %625 = vmatprep.subr.mxu0 0.0
    %626 = vmatpush1.msra.mxu0 %v22
    %627 = vmatprep.subr.mxu0 0.0
    %628 = vmatpush1.msra.mxu0 %v23
    %629 = vmatprep.subr.mxu0 0.0
    %630 = vmatpush1.msra.mxu0 %v24
    %631 = vmatprep.subr.mxu0 0.0
    %632 = vmatpush1.msra.mxu0 %v25
    %633 = vmatprep.subr.mxu0 0.0
    %634 = vmatpush1.msra.mxu0 0.0
    %635 = vmatprep.subr.mxu0 0.0
    %636 = vmatpush1.msra.mxu0 0.0
    %637 = vmatprep.subr.mxu0 0.0
    %638 = vmatpush1.msra.mxu0 0.0
    %639 = vmatprep.subr.mxu0 0.0
    %640 = vmatpush1.msra.mxu0 0.0
    %641 = vmatprep.subr.mxu0 0.0
    %642 = vmatpush1.msra.mxu0 0.0
    %643 = vmatprep.subr.mxu0 0.0
    %644 = vmatpush1.msra.mxu0 0.0
    %645 = vmatprep.subr.mxu0 0.0
    %646 = vmatpush1.msra.mxu0 0.0
    %647 = vmatprep.subr.mxu0 0.0
    %648 = vmatpush1.msra.mxu0 0.0
    %649 = vmatprep.subr.mxu0 0.0
    %650 = vmatpush1.msra.mxu0 0.0
    %651 = vmatprep.subr.mxu0 0.0
    %652 = vmatpush1.msra.mxu0 0.0
    %653 = vmatprep.subr.mxu0 0.0
    %654 = vmatpush1.msra.mxu0 0.0
    %655 = vmatprep.subr.mxu0 0.0
    %656 = vmatpush1.msra.mxu0 0.0
    %657 = vmatprep.subr.mxu0 0.0
    %658 = vmatpush1.msra.mxu0 0.0
    %659 = vmatprep.subr.mxu0 0.0
    %660 = vmatpush1.msra.mxu0 0.0
    %661 = vmatprep.subr.mxu0 0.0
    %662 = vmatpush1.msra.mxu0 0.0
    %663 = vmatprep.subr.mxu0 0.0
    %664 = vmatpush1.msra.mxu0 0.0
    %665 = vmatprep.subr.mxu0 0.0
    %666 = vmatpush1.msra.mxu0 0.0
    %667 = vmatprep.subr.mxu0 0.0
    %668 = vmatpush1.msra.mxu0 0.0
    %669 = vmatprep.subr.mxu0 0.0
    %670 = vmatpush1.msra.mxu0 0.0
    %671 = vmatprep.subr.mxu0 0.0
    %672 = vmatpush1.msra.mxu0 0.0
    %673 = vmatprep.subr.mxu0 0.0
    %674 = vmatpush1.msra.mxu0 0.0
    %675 = vmatprep.subr.mxu0 0.0
    %676 = vmatpush1.msra.mxu0 0.0
    %677 = vmatprep.subr.mxu0 0.0
    %678 = vmatpush1.msra.mxu0 0.0
    %679 = vmatprep.subr.mxu0 0.0
    %680 = vmatpush1.msra.mxu0 0.0
    %681 = vmatprep.subr.mxu0 0.0
    %682 = vmatpush1.msra.mxu0 0.0
    %683 = vmatprep.subr.mxu0 0.0
    %684 = vmatpush1.msra.mxu0 0.0
    %685 = vmatprep.subr.mxu0 0.0
    %686 = vmatpush1.msra.mxu0 0.0
    %687 = vmatprep.subr.mxu0 0.0
    %688 = vmatpush1.msra.mxu0 0.0
    %689 = vmatprep.mubr.f32.mxu0 0.0
    %690 = vmatmul.mubr.f32.gmra.mrb[0].mxu0 %v623
    %v691 = vpop.f32.mrb[0].mxu0
    %v692 = vadd.f32 0.0, %v691
    %v693 = vpop.f32.mrb[0].mxu0
    %694 = vdwg.mxu0
    %v695 = vadd.f32 %v619, %v692
    %v696 = vtanh.pop %v695
    %v697 = vmul.f32 %v696, 0.5
    %v698 = vadd.f32 %v697, 0.5
    %v699 = vmul.f32 %v698, %v611
    %701 = vrot.lane.b32.xlu0 %v696, 32
    %v702 = vpop.permute.xlu0 %701
    %v704 = vmul.f32 %v698, %v702
    %706 = vrot.lane.b32.xlu0 %v704, 32
    %v707 = vpop.permute.xlu0 %706
    %v709 = vadd.f32 %v699, %v707
    %v710 = vtanh.pop %v709
    %712 = vrot.lane.b32.xlu0 %v710, 32
    %v713 = vpop.permute.xlu0 %712
    %v715 = vmul.f32 %v698, %v713
    %s716 = scalar_lea.vmem %s0, 14
    %v717 = vld [vmem:[%s716] sm:$0x3]
    %719 = vrot.lane.b32.xlu0 %v715, 64
    %v720 = vpop.permute.xlu0 %719
    %v721 = vsel %vm29, %v720, 0
    %723 = vmatprep.subr.mxu0 0.0
    %724 = vmatpush1.msra.mxu0 %v22
    %725 = vmatprep.subr.mxu0 0.0
    %726 = vmatpush1.msra.mxu0 %v23
    %727 = vmatprep.subr.mxu0 0.0
    %728 = vmatpush1.msra.mxu0 %v24
    %729 = vmatprep.subr.mxu0 0.0
    %730 = vmatpush1.msra.mxu0 %v25
    %731 = vmatprep.subr.mxu0 0.0
    %732 = vmatpush1.msra.mxu0 0.0
    %733 = vmatprep.subr.mxu0 0.0
    %734 = vmatpush1.msra.mxu0 0.0
    %735 = vmatprep.subr.mxu0 0.0
    %736 = vmatpush1.msra.mxu0 0.0
    %737 = vmatprep.subr.mxu0 0.0
    %738 = vmatpush1.msra.mxu0 0.0
    %739 = vmatprep.subr.mxu0 0.0
    %740 = vmatpush1.msra.mxu0 0.0
    %741 = vmatprep.subr.mxu0 0.0
    %742 = vmatpush1.msra.mxu0 0.0
    %743 = vmatprep.subr.mxu0 0.0
    %744 = vmatpush1.msra.mxu0 0.0
    %745 = vmatprep.subr.mxu0 0.0
    %746 = vmatpush1.msra.mxu0 0.0
    %747 = vmatprep.subr.mxu0 0.0
    %748 = vmatpush1.msra.mxu0 0.0
    %749 = vmatprep.subr.mxu0 0.0
    %750 = vmatpush1.msra.mxu0 0.0
    %751 = vmatprep.subr.mxu0 0.0
    %752 = vmatpush1.msra.mxu0 0.0
    %753 = vmatprep.subr.mxu0 0.0
    %754 = vmatpush1.msra.mxu0 0.0
    %755 = vmatprep.subr.mxu0 0.0
    %756 = vmatpush1.msra.mxu0 0.0
    %757 = vmatprep.subr.mxu0 0.0
    %758 = vmatpush1.msra.mxu0 0.0
    %759 = vmatprep.subr.mxu0 0.0
    %760 = vmatpush1.msra.mxu0 0.0
    %761 = vmatprep.subr.mxu0 0.0
    %762 = vmatpush1.msra.mxu0 0.0
    %763 = vmatprep.subr.mxu0 0.0
    %764 = vmatpush1.msra.mxu0 0.0
    %765 = vmatprep.subr.mxu0 0.0
    %766 = vmatpush1.msra.mxu0 0.0
    %767 = vmatprep.subr.mxu0 0.0
    %768 = vmatpush1.msra.mxu0 0.0
    %769 = vmatprep.subr.mxu0 0.0
    %770 = vmatpush1.msra.mxu0 0.0
    %771 = vmatprep.subr.mxu0 0.0
    %772 = vmatpush1.msra.mxu0 0.0
    %773 = vmatprep.subr.mxu0 0.0
    %774 = vmatpush1.msra.mxu0 0.0
    %775 = vmatprep.subr.mxu0 0.0
    %776 = vmatpush1.msra.mxu0 0.0
    %777 = vmatprep.subr.mxu0 0.0
    %778 = vmatpush1.msra.mxu0 0.0
    %779 = vmatprep.subr.mxu0 0.0
    %780 = vmatpush1.msra.mxu0 0.0
    %781 = vmatprep.subr.mxu0 0.0
    %782 = vmatpush1.msra.mxu0 0.0
    %783 = vmatprep.subr.mxu0 0.0
    %784 = vmatpush1.msra.mxu0 0.0
    %785 = vmatprep.subr.mxu0 0.0
    %786 = vmatpush1.msra.mxu0 0.0
    %787 = vmatprep.mubr.f32.mxu0 0.0
    %788 = vmatmul.mubr.f32.gmra.mrb[0].mxu0 %v721
    %v789 = vpop.f32.mrb[0].mxu0
    %v790 = vadd.f32 0.0, %v789
    %v791 = vpop.f32.mrb[0].mxu0
    %792 = vdwg.mxu0
    %v793 = vadd.f32 %v717, %v790
    %v794 = vtanh.pop %v793
    %v795 = vmul.f32 %v794, 0.5
    %v796 = vadd.f32 %v795, 0.5
    %v797 = vmul.f32 %v796, %v709
    %799 = vrot.lane.b32.xlu0 %v794, 32
    %v800 = vpop.permute.xlu0 %799
    %v802 = vmul.f32 %v796, %v800
    %804 = vrot.lane.b32.xlu0 %v802, 32
    %v805 = vpop.permute.xlu0 %804
    %v807 = vadd.f32 %v797, %v805
    %v808 = vtanh.pop %v807
    %810 = vrot.lane.b32.xlu0 %v808, 32
    %v811 = vpop.permute.xlu0 %810
    %v813 = vmul.f32 %v796, %v811
    %815 = vrot.lane.b32.xlu0 %v813, 64
    %v816 = vpop.permute.xlu0 %815
    %vm818 = vcmask 254976
    %819 = vst.msk [vmem:[#allocation2] sm:$0x3] %vm818, %v816
    %821 = vrot.lane.b32.xlu0 %v807, 96
    %v822 = vpop.permute.xlu0 %821
    %824 = vst.msk [vmem:[#allocation3] sm:$0x3] %vm818, %v822
    // Predicated region
    $region14: #{lstm_encoder_prepared.3} parent=1 // pred_check
      %p825 = pneg %p15
    $region15: #{lstm_encoder_prepared.3} parent=1 // pred_check_branch
      %827 = sbr.rel (%p825) target = $region17
    $region16: #{lstm_encoder_prepared.3} parent=1 // pred_region
      %828 = vst.msk [vmem:[#allocation4] sm:$0x3] %vm818, %v816
      %829 = vst.msk [vmem:[#allocation6] sm:$0x3] %vm818, %v822
    $region17: #{lstm_encoder_prepared.3} parent=1 // pred_fallthru
      _
    // Predicated region
    $region18: #{lstm_encoder_prepared.3} parent=1 // pred_check
      _
    $region19: #{lstm_encoder_prepared.3} parent=1 // pred_check_branch
      %831 = sbr.rel (0) target = $region21
    $region20: #{lstm_encoder_prepared.3} parent=1 // pred_region
      %s833 = ssub.s32 32, 32
      %834 = vsyncadd [#allocation5], %s833
      %s836 = sshll.u32 [#allocation4], 4
      %s837 = int_to_ptr.vmem [resolvable:$true] %s836
      %839 = dma.vmem_to_hbm [thread:$0]  %s837, 32, %s2, [#allocation5]
    $region21: #{lstm_encoder_prepared.3} parent=1 // pred_fallthru
      _
    // Predicated region
    $region22: #{lstm_encoder_prepared.3} parent=1 // pred_check
      _
    $region23: #{lstm_encoder_prepared.3} parent=1 // pred_check_branch
      %841 = sbr.rel (0) target = $region25
    $region24: #{lstm_encoder_prepared.3} parent=1 // pred_region
      %s843 = ssub.s32 32, 32
      %844 = vsyncadd [#allocation7], %s843
      %s846 = sshll.u32 [#allocation6], 4
      %s847 = int_to_ptr.vmem [resolvable:$true] %s846
      %849 = dma.vmem_to_hbm [thread:$0]  %s847, 32, %s3, [#allocation7]
    $region25: #{lstm_encoder_prepared.3} parent=1 // pred_fallthru
      _
    // Predicated region
    $region26: #{lstm_encoder_prepared.3} parent=1 // pred_check
      _
    $region27: #{lstm_encoder_prepared.3} parent=1 // pred_check_branch
      %851 = sbr.rel (0) target = $region29
    $region28: #{lstm_encoder_prepared.3} parent=1 // pred_region
      %852 = dma.done [#allocation5], 32
    $region29: #{lstm_encoder_prepared.3} parent=1 // pred_fallthru
      _
    // Predicated region
    $region30: #{lstm_encoder_prepared.3} parent=1 // pred_check
      _
    $region31: #{lstm_encoder_prepared.3} parent=1 // pred_check_branch
      %854 = sbr.rel (0) target = $region33
    $region32: #{lstm_encoder_prepared.3} parent=1 // pred_region
      %855 = dma.done [#allocation7], 32
    $region33: #{lstm_encoder_prepared.3} parent=1 // pred_fallthru
      _
    %856 = vsyncpa [#allocation5], 1
    %857 = vsyncpa [#allocation7], 1

</llo_original>
